<compile_context>
chip_gen: v6e
topology: v6e:2x2x1
jax: 0.10.0
libtpu: 0.0.40
codegen_flags: <defaults>
</compile_context>

<pallas_src>
import functools
import math

import jax
import jax.numpy as jnp
from jax.experimental import pallas as pl
from jax.experimental.pallas import tpu as pltpu


def fc_kernel(x_ref, w_ref, b_ref, o_ref, *, tk):
    # grid = (N // tn, F // tk); axis 0 = output-column tile ("parallel",
    # sharded across TensorCores on v7x), axis 1 = reduction over F
    # ("arbitrary", innermost).  o_ref's index map ignores k, so its block is
    # VMEM-resident across the whole reduction -> accumulate directly into it.
    k = pl.program_id(1)

    start = k * tk
    if tk % 128 == 0:
        start = pl.multiple_of(start, 128)
    xk = x_ref[:, pl.ds(start, tk)]                   # (B, tk) bf16, resident x

    partial = jnp.dot(xk, w_ref[...], preferred_element_type=jnp.float32)

    @pl.when(k == 0)
    def _():
        o_ref[...] = partial

    @pl.when(k != 0)
    def _():
        o_ref[...] += partial

    @pl.when(k == pl.num_programs(1) - 1)
    def _():
        o_ref[...] += b_ref[...]                      # bias broadcast over B rows


def _pick_tk(F, tn, *, tile_bytes_budget=4 * 1024 * 1024):
    """Largest K tile such that the bf16 weight tile (tk, tn) stays under
    `tile_bytes_budget` (Pallas double-buffers it -> 2x that in VMEM) and tk
    divides F.  Prefers multiples of 128 for aligned full-lane DMAs."""
    cap = max(128, tile_bytes_budget // (tn * 2))     # bf16 = 2 bytes/elem
    if F <= cap:
        return F
    best_any = None
    for tk in range(cap, 0, -1):
        if F % tk == 0:
            if tk % 128 == 0:
                return tk
            if best_any is None:
                best_any = tk
    if best_any is not None:
        return best_any
    # TODO(synk): ragged F with no divisor <= cap; falls back to one K block
    # (may require raising vmem_limit_bytes for very large F).
    return F


def resnet_caffe_finetune_fc(x, weight_t, bias, *, tn=256, tk=None):
    """Pallas implementation of `self.fc(x)` = x @ W.T + b.

    x        : (B, F)  float32  -- output of the frozen body_model, flattened
    weight_t : (F, N)           -- fc.weight transposed (PyTorch stores (N, F))
    bias     : (N,) or (1, N)   -- fc.bias
    returns  : (B, N)  float32
    """
    B, F = x.shape
    Fw, N = weight_t.shape
    assert F == Fw, "weight_t must be (F, N)"
    if N % tn != 0 or tn % 128 != 0:
        tn = N                                        # collapse N axis if ragged

    if tk is None:
        tk = _pick_tk(F, tn)
    assert F % tk == 0

    nj = N // tn
    # One-time relayout of the frozen fc weight: (F, N) -> (nj, F, tn) bf16 so
    # each streamed (tk, tn) tile is a contiguous HBM slab (column-slicing the
    # row-major (F, N) array is strided when tn < N).
    w3 = jnp.transpose(
        weight_t.astype(jnp.bfloat16).reshape(F, nj, tn), (1, 0, 2))

    x_bf16 = x.astype(jnp.bfloat16)                   # halve the (tiny) x stream
    b2 = jnp.reshape(bias, (1, N)).astype(jnp.float32)

    cost = pl.CostEstimate(
        flops=2 * B * F * N,
        transcendentals=0,
        bytes_accessed=w3.size * 2 + x_bf16.size * 2 + b2.size * 4 + B * N * 4,
    )

    kernel = functools.partial(fc_kernel, tk=tk)

    return pl.pallas_call(
        kernel,
        out_shape=jax.ShapeDtypeStruct((B, N), jnp.float32),
        grid_spec=pltpu.PrefetchScalarGridSpec(
            num_scalar_prefetch=0,
            grid=(nj, F // tk),                       # (parallel, reduction-last)
            in_specs=[
                pl.BlockSpec((B, F), lambda j, k: (0, 0)),           # x: resident
                pl.BlockSpec((None, tk, tn), lambda j, k: (j, k, 0)),  # weight slab
                pl.BlockSpec((1, tn), lambda j, k: (0, j)),          # bias tile
            ],
            out_specs=pl.BlockSpec((B, tn), lambda j, k: (0, j)),    # lane-dense,
        ),                                                           # resident over k
        compiler_params=pltpu.CompilerParams(
            dimension_semantics=("parallel", "arbitrary"),
            vmem_limit_bytes=32 * 1024 * 1024,        # safe headroom on all gens
        ),
        cost_estimate=cost,
    )(x_bf16, w3, b2)


def init_fc_params(key, in_features, out_features=512):
    """Matches the PyTorch module's init:
    weight ~ U(-scale, scale) with scale = sqrt(3 / in_features); bias = 0."""
    scale = math.sqrt(3.0 / in_features)              # calculate_scale, 2-D weight
    w = jax.random.uniform(
        key, (out_features, in_features), dtype=jnp.float32,
        minval=-scale, maxval=scale,
    )
    b = jnp.zeros((out_features,), dtype=jnp.float32)
    return w, b


if __name__ == "__main__":
    key = jax.random.PRNGKey(0)
    k_x, k_w = jax.random.split(key)

    # Small, shape-consistent config: body_model.k = 0.04 -> round(12800*0.04) = 512
    body_k = 0.04
    in_features = round(12800 * body_k)               # 512
    out_features = 512
    batch = 8

    # Synthetic frozen-body-model output (the fc input)
    x = jax.random.normal(k_x, (batch, in_features), dtype=jnp.float32)

    # fc parameters, deterministic init per the module's __init__
    w, b = init_fc_params(k_w, in_features, out_features)
    w_t = jnp.transpose(w)                            # (in_features, out_features)

    # Default tiling (single K step at this small F)
    out = resnet_caffe_finetune_fc(x, w_t, b)
    out = jax.block_until_ready(out)
    assert out.shape == (batch, out_features)

    # Force a multi-step reduction to exercise the accumulate-into-output path
    out_multi = resnet_caffe_finetune_fc(x, w_t, b, tk=128)
    out_multi = jax.block_until_ready(out_multi)

    # Reference 1: same bf16-input math in plain JAX (tight tolerance)
    ref_bf16 = jnp.dot(
        x.astype(jnp.bfloat16), w_t.astype(jnp.bfloat16),
        preferred_element_type=jnp.float32,
    ) + b.reshape(1, -1)
    assert jnp.allclose(out, ref_bf16, atol=2e-3, rtol=2e-3), "mismatch vs bf16 ref"
    assert jnp.allclose(out_multi, ref_bf16, atol=2e-3, rtol=2e-3), "multi-K mismatch"

    # Reference 2: full-precision torch.nn.Linear math (loose tolerance, bf16 inputs)
    ref_f32 = x @ w.T + b
    assert jnp.allclose(out, ref_f32, atol=8e-2, rtol=8e-2), "mismatch vs f32 ref"

    print("KERNEL_OK")
</pallas_src>

<mosaic_0001>
module attributes {stable_mosaic.version = 11 : i64} {
  func.func @fc_kernel(%arg0: i32, %arg1: i32, %arg2: memref<8x512xbf16, #tpu.memory_space<vmem>>, %arg3: memref<1x512x256xbf16, #tpu.memory_space<vmem>>, %arg4: memref<1x256xf32, #tpu.memory_space<vmem>>, %arg5: memref<8x256xf32, #tpu.memory_space<vmem>>) attributes {dimension_semantics = [#tpu.dimension_semantics<parallel>, #tpu.dimension_semantics<arbitrary>], iteration_bounds = array<i64: 2, 1>, scalar_prefetch = 0 : i64, scratch_operands = 0 : i64, tpu.core_type = #tpu.core_type<tc>, window_params = [{pipeline_mode = #tpu.pipeline_mode<synchronous>, transform_indices = @transform_0, window_bounds = array<i64: 8, 512>}, {transform_indices = @transform_1, window_bounds = array<i64: 1, 512, 256>}, {transform_indices = @transform_2, window_bounds = array<i64: 1, 256>}, {transform_indices = @transform_3, window_bounds = array<i64: 8, 256>}]} {
    %c512_i32 = arith.constant 512 : i32
    %0 = arith.muli %arg1, %c512_i32 : i32
    %1 = tpu.assume_multiple %0, 128 : i32
    %c0 = arith.constant 0 : index
    %2 = arith.index_cast %1 : i32 to index
    %3 = vector.load %arg2[%c0, %2] : memref<8x512xbf16, #tpu.memory_space<vmem>>, vector<8x512xbf16>
    %c0_0 = arith.constant 0 : index
    %c0_1 = arith.constant 0 : index
    %c0_2 = arith.constant 0 : index
    %4 = vector.load %arg3[%c0_0, %c0_1, %c0_2] : memref<1x512x256xbf16, #tpu.memory_space<vmem>>, vector<1x512x256xbf16>
    %5 = vector.shape_cast %4 : vector<1x512x256xbf16> to vector<512x256xbf16>
    %cst = arith.constant dense<0.000000e+00> : vector<8x256xf32>
    %6 = tpu.matmul %3, %5, %cst {dimension_numbers = #tpu.dot_dimension_numbers<[1], [0], [0], [1], [0, 0, 1, 1], [], []>} : vector<8x512xbf16>, vector<512x256xbf16>, vector<8x256xf32> -> vector<8x256xf32>
    %c0_i32 = arith.constant 0 : i32
    %7 = arith.cmpi eq, %arg1, %c0_i32 : i32
    %8 = arith.extui %7 : i1 to i32
    %c0_i32_3 = arith.constant 0 : i32
    %9 = arith.cmpi ne, %8, %c0_i32_3 : i32
    scf.if %9 {
      %c0_8 = arith.constant 0 : index
      %c0_9 = arith.constant 0 : index
      %16 = vector.load %arg5[%c0_8, %c0_9] : memref<8x256xf32, #tpu.memory_space<vmem>>, vector<8x256xf32>
      tpu.vector_store %arg5[%c0_8, %c0_9], %6 {strides = array<i32>} : memref<8x256xf32, #tpu.memory_space<vmem>>, vector<8x256xf32>,
    } else {
    }
    %c0_i32_4 = arith.constant 0 : i32
    %10 = arith.cmpi ne, %arg1, %c0_i32_4 : i32
    %11 = arith.extui %10 : i1 to i32
    %c0_i32_5 = arith.constant 0 : i32
    %12 = arith.cmpi ne, %11, %c0_i32_5 : i32
    scf.if %12 {
      %c0_8 = arith.constant 0 : index
      %c0_9 = arith.constant 0 : index
      %16 = vector.load %arg5[%c0_8, %c0_9] : memref<8x256xf32, #tpu.memory_space<vmem>>, vector<8x256xf32>
      %17 = arith.addf %16, %6 : vector<8x256xf32>
      %c0_10 = arith.constant 0 : index
      %c0_11 = arith.constant 0 : index
      %18 = vector.load %arg5[%c0_10, %c0_11] : memref<8x256xf32, #tpu.memory_space<vmem>>, vector<8x256xf32>
      tpu.vector_store %arg5[%c0_10, %c0_11], %17 {strides = array<i32>} : memref<8x256xf32, #tpu.memory_space<vmem>>, vector<8x256xf32>,
    } else {
    }
    %c0_i32_6 = arith.constant 0 : i32
    %13 = arith.cmpi eq, %arg1, %c0_i32_6 : i32
    %14 = arith.extui %13 : i1 to i32
    %c0_i32_7 = arith.constant 0 : i32
    %15 = arith.cmpi ne, %14, %c0_i32_7 : i32
    scf.if %15 {
      %c0_8 = arith.constant 0 : index
      %c0_9 = arith.constant 0 : index
      %16 = vector.load %arg5[%c0_8, %c0_9] : memref<8x256xf32, #tpu.memory_space<vmem>>, vector<8x256xf32>
      %c0_10 = arith.constant 0 : index
      %c0_11 = arith.constant 0 : index
      %17 = vector.load %arg4[%c0_10, %c0_11] : memref<1x256xf32, #tpu.memory_space<vmem>>, vector<1x256xf32>
      %18 = vector.broadcast %17 : vector<1x256xf32> to vector<8x256xf32>
      %19 = arith.addf %16, %18 : vector<8x256xf32>
      %c0_12 = arith.constant 0 : index
      %c0_13 = arith.constant 0 : index
      %20 = vector.load %arg5[%c0_12, %c0_13] : memref<8x256xf32, #tpu.memory_space<vmem>>, vector<8x256xf32>
      tpu.vector_store %arg5[%c0_12, %c0_13], %19 {strides = array<i32>} : memref<8x256xf32, #tpu.memory_space<vmem>>, vector<8x256xf32>,
    } else {
    }
    return
  }
  func.func @transform_0(%arg0: i32, %arg1: i32) -> (i32, i32) {
    %c0_i32 = arith.constant 0 : i32
    %c0_i32_0 = arith.constant 0 : i32
    %c0_i32_1 = arith.constant 0 : i32
    return %c0_i32, %c0_i32_0 : i32, i32
  }
  func.func @transform_1(%arg0: i32, %arg1: i32) -> (i32, i32, i32) {
    %c0_i32 = arith.constant 0 : i32
    %c0_i32_0 = arith.constant 0 : i32
    return %arg0, %arg1, %c0_i32 : i32, i32, i32
  }
  func.func @transform_2(%arg0: i32, %arg1: i32) -> (i32, i32) {
    %c0_i32 = arith.constant 0 : i32
    %c0_i32_0 = arith.constant 0 : i32
    return %c0_i32, %arg0 : i32, i32
  }
  func.func @transform_3(%arg0: i32, %arg1: i32) -> (i32, i32) {
    %c0_i32 = arith.constant 0 : i32
    %c0_i32_0 = arith.constant 0 : i32
    return %c0_i32, %arg0 : i32, i32
  }
}

</mosaic_0001>

<llo_original>
// kernel: tpu_custom_call.1
$region0: #{tpu_custom_call.1}
  #allocation0 [shape = 'u32[]', space=smem, size = 0x4, offset = 0x4, fixed_abs, tag = 'smem constant byte address 0x4 - core index']
  #allocation1 [shape = 'u32[144,128]{1,0:T(1,128)}', space=vmem, size = 0x12000, scoped, tag = 'internal scratch']
  %s0 = inlined_call_operand.hbm [shape: bf16[8,512], index: 0, kind: input, shape index: {}]
  %s1 = inlined_call_operand.hbm [shape: bf16[2,512,256], index: 1, kind: input, shape index: {}]
  %s2 = inlined_call_operand.hbm [shape: f32[1,512], index: 2, kind: input, shape index: {}]
  %s3 = inlined_call_operand.hbm [shape: f32[8,512], index: 3, kind: output, shape index: {}]
  %s4 = sld [smem:[#allocation0]]
  $region69: #{tpu_custom_call.1} parent=0
    _
  %s6 = ssub.s32 1, %s4
  %s7 = scalar_select 0, %s6, %s4
  $region1: #{tpu_custom_call.1} parent=0
    #allocation2 [shape = 'u8[8192]{0}', space=vmem, size = 0x2000, scoped, tag = 'input window, operand 0, single buffered']
    #allocation3 [shape = 's32[2]{0}', space=sflag, size = 0x8, scoped, tag = 'scoped memory for tpu_custom_call.1']
    #allocation4 [shape = 's32[2]{0}', space=sflag, size = 0x8, scoped, tag = 'scoped memory for tpu_custom_call.1']
    #allocation5 [shape = 'u8[524288]{0}', space=vmem, size = 0x80000, scoped, tag = 'input window, operand 1']
    #allocation6 [shape = 's32[2]{0}', space=sflag, size = 0x8, scoped, tag = 'scoped memory for tpu_custom_call.1']
    #allocation7 [shape = 'u8[2048]{0}', space=vmem, size = 0x800, scoped, tag = 'input window, operand 2']
    #allocation8 [shape = 'u8[16384]{0}', space=vmem, size = 0x4000, scoped, tag = 'output window, operand 0']
    %8 = vsyncpa [#allocation3], 0
    %9 = vsyncpa [#allocation6], 0
    %s10 = scalar_lea.sflag [#allocation6], 1
    %11 = vsyncpa %s10, 0
    %12 = vsyncpa [#allocation4], 0
    %s13 = scalar_lea.sflag [#allocation4], 1
    %14 = vsyncpa %s13, 0
    loop: start=0, step=1, limit=4
    $region2: #{tpu_custom_call.1} parent=1 // loop_pre_header
      _
    $region3: #{tpu_custom_call.1} parent=1 // loop_header
      %s16 = sphi 0, %s20
      %p17 = scmp.ge.s32.totalorder %s16, 4
      %s23 = sphi 0, %s35
      %s24 = sphi 0, %s31
      %s25 = sphi 0, %s23
      %s26 = sphi 0, %s24
      %s27 = sphi 0, %s25
      %s28 = sphi 0, %s26
      %s36 = sphi 0, %s36
      %s38 = sphi 0, %s36
      %s39 = sphi 0, %s38
      %s53 = sphi 0, %s39
      %s61 = sphi 0, %s63
      %s64 = sphi 0, %s61
      %s65 = sphi 0, %s64
      %s81 = sphi 0, %s65
      %s87 = sphi 0, %s89
      %s90 = sphi 0, %s87
      %s91 = sphi 0, %s90
      %s107 = sphi 0, %s91
      %s113 = sphi 0, %s115
      %s116 = sphi 0, %s113
      %s117 = sphi 0, %s116
      %s133 = sphi 0, %s117
    $region4: #{tpu_custom_call.1} parent=1 // loop_header_branch
      %19 = sbr.rel (%p17) target = $region8
    $region5: #{tpu_custom_call.1} parent=1 // loop_body
      %s21 = ssub.s32 %s16, 1
      %s22 = ssub.s32 %s16, 2
      %s29 = sadd.s32 1, %s24
      %p30 = scmp.ge.s32.totalorder %s29, 1
      %s31 = scalar_select %p30, 0, %s29
      %s32 = sadd.s32 1, %s23
      %s33 = scalar_select %p30, %s32, %s23
      %p34 = scmp.ge.s32.totalorder %s33, 2
      %s35 = scalar_select %p34, 0, %s33
      %s37 = sadd.s32 %s36, 1
      %p40 = scmp.eq.s32.totalorder %s16, 1
      %p41 = scmp.ne.s32.totalorder %s36, %s38
      %p42 = scmp.eq.s32.totalorder %s16, 0
      %p43 = por %p41, %p42
      %p44 = scmp.ne.s32.totalorder %s36, %s38
      %p45 = scmp.eq.s32.totalorder %s21, 1
      %p46 = por %p44, %p45
      %p47 = scmp.ne.s32.totalorder %s38, %s39
      %p48 = scmp.eq.s32.totalorder %s21, 0
      %p49 = por %p47, %p48
      %p50 = scmp.ne.s32.totalorder %s38, %s39
      %p51 = scmp.eq.s32.totalorder %s22, 1
      %p52 = por %p50, %p51
      %p54 = scmp.ne.s32.totalorder %s39, %s53
      %p55 = scmp.eq.s32.totalorder %s22, 0
      %p56 = por %p54, %p55
      %s57 = ssub.s32 %s23, %s35
      %s58 = ssub.s32 %s24, %s31
      %s59 = sor.u32 %s57, %s58
      %p60 = scmp.eq.s32.totalorder %s59, 0
      %s62 = sadd.s32 %s61, 1
      %s63 = scalar_select %p60, %s61, %s62
      %p66 = pneg %p60
      %p67 = scmp.eq.s32.totalorder %s16, 1
      %p68 = por %p66, %p67
      %p69 = scmp.ne.s32.totalorder %s61, %s64
      %p70 = scmp.eq.s32.totalorder %s16, 0
      %p71 = por %p69, %p70
      %p72 = scmp.ne.s32.totalorder %s61, %s64
      %p73 = scmp.eq.s32.totalorder %s21, 1
      %p74 = por %p72, %p73
      %p75 = scmp.ne.s32.totalorder %s64, %s65
      %p76 = scmp.eq.s32.totalorder %s21, 0
      %p77 = por %p75, %p76
      %p78 = scmp.ne.s32.totalorder %s64, %s65
      %p79 = scmp.eq.s32.totalorder %s22, 1
      %p80 = por %p78, %p79
      %p82 = scmp.ne.s32.totalorder %s65, %s81
      %p83 = scmp.eq.s32.totalorder %s22, 0
      %p84 = por %p82, %p83
      %s85 = ssub.s32 %s23, %s35
      %p86 = scmp.eq.s32.totalorder %s85, 0
      %s88 = sadd.s32 %s87, 1
      %s89 = scalar_select %p86, %s87, %s88
      %p92 = pneg %p86
      %p93 = scmp.eq.s32.totalorder %s16, 1
      %p94 = por %p92, %p93
      %p95 = scmp.ne.s32.totalorder %s87, %s90
      %p96 = scmp.eq.s32.totalorder %s16, 0
      %p97 = por %p95, %p96
      %p98 = scmp.ne.s32.totalorder %s87, %s90
      %p99 = scmp.eq.s32.totalorder %s21, 1
      %p100 = por %p98, %p99
      %p101 = scmp.ne.s32.totalorder %s90, %s91
      %p102 = scmp.eq.s32.totalorder %s21, 0
      %p103 = por %p101, %p102
      %p104 = scmp.ne.s32.totalorder %s90, %s91
      %p105 = scmp.eq.s32.totalorder %s22, 1
      %p106 = por %p104, %p105
      %p108 = scmp.ne.s32.totalorder %s91, %s107
      %p109 = scmp.eq.s32.totalorder %s22, 0
      %p110 = por %p108, %p109
      %s111 = ssub.s32 %s23, %s35
      %p112 = scmp.eq.s32.totalorder %s111, 0
      %s114 = sadd.s32 %s113, 1
      %s115 = scalar_select %p112, %s113, %s114
      %p118 = pneg %p112
      %p119 = scmp.eq.s32.totalorder %s16, 1
      %p120 = por %p118, %p119
      %p121 = scmp.ne.s32.totalorder %s113, %s116
      %p122 = scmp.eq.s32.totalorder %s16, 0
      %p123 = por %p121, %p122
      %p124 = scmp.ne.s32.totalorder %s113, %s116
      %p125 = scmp.eq.s32.totalorder %s21, 1
      %p126 = por %p124, %p125
      %p127 = scmp.ne.s32.totalorder %s116, %s117
      %p128 = scmp.eq.s32.totalorder %s21, 0
      %p129 = por %p127, %p128
      %p130 = scmp.ne.s32.totalorder %s116, %s117
      %p131 = scmp.eq.s32.totalorder %s22, 1
      %p132 = por %p130, %p131
      %p134 = scmp.ne.s32.totalorder %s117, %s133
      %p135 = scmp.eq.s32.totalorder %s22, 0
      %p136 = por %p134, %p135
      %p137 = scmp.le.s32.totalorder 1, %s16
      %p138 = scmp.lt.s32.totalorder %s16, 3
      %p139 = pnand %p137, %p138
      %p140 = pneg %p139
      // Predicated region
      $region9: #{tpu_custom_call.1} parent=5 // pred_check
        _
      $region10: #{tpu_custom_call.1} parent=5 // pred_check_branch
        %142 = sbr.rel (%p139) target = $region12
      $region11: #{tpu_custom_call.1} parent=5 // pred_region
        %s143 = ssub.s32 %s16, 1
        // Predicated region
        $region13: #{tpu_custom_call.1} parent=11 // pred_check
          %p144 = pneg %p49
        $region14: #{tpu_custom_call.1} parent=11 // pred_check_branch
          %146 = sbr.rel (%p144) target = $region16
        $region15: #{tpu_custom_call.1} parent=11 // pred_region
          %s148 = ssub.s32 256, 256
          %149 = vsyncadd [#allocation3], %s148
          %s151 = sshll.u32 [#allocation2], 4
          %s152 = int_to_ptr.vmem [resolvable:$true] %s151
          %154 = dma.hbm_to_vmem [thread:$0]  %s0, 256, %s152, [#allocation3]
        $region16: #{tpu_custom_call.1} parent=11 // pred_fallthru
          _
      $region12: #{tpu_custom_call.1} parent=5 // pred_fallthru
        _
      %p155 = scmp.lt.s32.totalorder %s16, 2
      // Predicated region
      $region17: #{tpu_custom_call.1} parent=5 // pred_check
        %p156 = pneg %p155
      $region18: #{tpu_custom_call.1} parent=5 // pred_check_branch
        %158 = sbr.rel (%p156) target = $region20
      $region19: #{tpu_custom_call.1} parent=5 // pred_region
        // Predicated region
        $region21: #{tpu_custom_call.1} parent=19 // pred_check
          %p159 = pneg %p71
        $region22: #{tpu_custom_call.1} parent=19 // pred_check_branch
          %161 = sbr.rel (%p159) target = $region24
        $region23: #{tpu_custom_call.1} parent=19 // pred_region
          %s162 = sand.u32 %s16, 1
          %s163 = scalar_lea.sflag [#allocation6], %s162
          %s164 = sand.u32 %s61, 1
          %s165 = smul.addr %s164, 512
          %s166 = scalar_lea.vmem [#allocation5], %s165
          %s167 = smul.u32 64, %s24
          %s169 = ssub.s32 8192, 8192
          %170 = vsyncadd %s163, %s169
          %s171 = smul.addr %s167, 2
          %s172 = smul.addr %s23, 128
          %s173 = sadd.s32 %s171, %s172
          %s174 = smul.addr %s173, 64
          %s175 = scalar_lea.hbm %s1, %s174
          %s176 = sshll.u32 %s166, 4
          %s177 = int_to_ptr.vmem [resolvable:$true] %s176
          %182 = dma.hbm_to_vmem [thread:$0]  %s175, 8192, %s177, %s163, 128, 128, 8
        $region24: #{tpu_custom_call.1} parent=19 // pred_fallthru
          _
        // Predicated region
        $region25: #{tpu_custom_call.1} parent=19 // pred_check
          %p183 = pneg %p97
        $region26: #{tpu_custom_call.1} parent=19 // pred_check_branch
          %185 = sbr.rel (%p183) target = $region28
        $region27: #{tpu_custom_call.1} parent=19 // pred_region
          %s186 = sand.u32 %s16, 1
          %s187 = scalar_lea.sflag [#allocation6], %s186
          %s188 = sand.u32 %s87, 1
          %s189 = smul.addr %s188, 2
          %s190 = scalar_lea.vmem [#allocation7], %s189
          %s191 = smul.u32 2, %s23
          %s193 = ssub.s32 32, 32
          %194 = vsyncadd %s187, %s193
          %s195 = smul.addr %s191, 16
          %s196 = scalar_lea.hbm %s2, %s195
          %s198 = sshll.u32 %s190, 4
          %s199 = int_to_ptr.vmem [resolvable:$true] %s198
          %201 = dma.hbm_to_vmem [thread:$0]  %s196, 32, %s199, %s187
        $region28: #{tpu_custom_call.1} parent=19 // pred_fallthru
          _
      $region20: #{tpu_custom_call.1} parent=5 // pred_fallthru
        _
      %p202 = scmp.le.s32.totalorder 1, %s16
      %p203 = scmp.lt.s32.totalorder %s16, 3
      %p204 = pnand %p202, %p203
      %p205 = pneg %p204
      // Predicated region
      $region29: #{tpu_custom_call.1} parent=5 // pred_check
        _
      $region30: #{tpu_custom_call.1} parent=5 // pred_check_branch
        %207 = sbr.rel (%p204) target = $region32
      $region31: #{tpu_custom_call.1} parent=5 // pred_region
        %s208 = ssub.s32 %s16, 1
        // Predicated region
        $region33: #{tpu_custom_call.1} parent=31 // pred_check
          %p209 = pneg %p49
        $region34: #{tpu_custom_call.1} parent=31 // pred_check_branch
          %211 = sbr.rel (%p209) target = $region36
        $region35: #{tpu_custom_call.1} parent=31 // pred_region
          %212 = dma.done [#allocation3], 256
        $region36: #{tpu_custom_call.1} parent=31 // pred_fallthru
          _
        %s213 = sand.u32 %s21, 1
        %s214 = scalar_lea.sflag [#allocation6], %s213
        %s215 = sand.u32 %s64, 1
        %s216 = smul.addr %s215, 512
        %s217 = scalar_lea.vmem [#allocation5], %s216
        // Predicated region
        $region37: #{tpu_custom_call.1} parent=31 // pred_check
          %p218 = pneg %p77
        $region38: #{tpu_custom_call.1} parent=31 // pred_check_branch
          %220 = sbr.rel (%p218) target = $region40
        $region39: #{tpu_custom_call.1} parent=31 // pred_region
          %221 = dma.done %s214, 8192
        $region40: #{tpu_custom_call.1} parent=31 // pred_fallthru
          _
        %s222 = sand.u32 %s21, 1
        %s223 = scalar_lea.sflag [#allocation6], %s222
        %s224 = sand.u32 %s90, 1
        %s225 = smul.addr %s224, 2
        %s226 = scalar_lea.vmem [#allocation7], %s225
        // Predicated region
        $region41: #{tpu_custom_call.1} parent=31 // pred_check
          %p227 = pneg %p103
        $region42: #{tpu_custom_call.1} parent=31 // pred_check_branch
          %229 = sbr.rel (%p227) target = $region44
        $region43: #{tpu_custom_call.1} parent=31 // pred_region
          %230 = dma.done %s223, 32
        $region44: #{tpu_custom_call.1} parent=31 // pred_fallthru
          _
        %p231 = pneg %p49
        %p232 = pneg %p46
        %s233 = sand.u32 %s21, 1
        %s234 = scalar_lea.sflag [#allocation6], %s233
        %s235 = sand.u32 %s64, 1
        %s236 = smul.addr %s235, 512
        %s237 = scalar_lea.vmem [#allocation5], %s236
        %p238 = pneg %p77
        %p239 = pneg %p74
        %s240 = sand.u32 %s21, 1
        %s241 = scalar_lea.sflag [#allocation6], %s240
        %s242 = sand.u32 %s90, 1
        %s243 = smul.addr %s242, 2
        %s244 = scalar_lea.vmem [#allocation7], %s243
        %p245 = pneg %p103
        %p246 = pneg %p100
        %p247 = pneg %p129
        %p248 = pneg %p126
        %s249 = sand.u32 %s116, 1
        %s250 = scalar_lea.sflag [#allocation4], %s249
        %s251 = sand.u32 %s116, 1
        %s252 = smul.addr %s251, 16
        %s253 = scalar_lea.vmem [#allocation8], %s252
        %s254 = smul.u32 64, %s26
        %s255 = smul.u32 2, %s25
        %s256 = smul.u32 2, %s25
        %s257 = smul.u32 %s26, 512
        %s258 = sshra.s32 %s257, 7
        %s259 = sand.u32 %s257, 127
        %s260 = smul.addr %s258, 4
        %s261 = scalar_lea.vmem [#allocation2], %s260
        %v262 = vld [vmem:[%s261] sm:$0xff]
        %v263 = vld [vmem:[%s261 + $0x8] sm:$0xff]
        %v264 = vld [vmem:[%s217] sm:$0xff]
        %v265 = vld [vmem:[%s217 + $0x8] sm:$0xff]
        %v266 = vld [vmem:[%s217 + $0x10] sm:$0xff]
        %v267 = vld [vmem:[%s217 + $0x18] sm:$0xff]
        %v268 = vld [vmem:[%s217 + $0x20] sm:$0xff]
        %v269 = vld [vmem:[%s217 + $0x28] sm:$0xff]
        %v270 = vld [vmem:[%s217 + $0x30] sm:$0xff]
        %v271 = vld [vmem:[%s217 + $0x38] sm:$0xff]
        %v272 = vld [vmem:[%s217 + $0x40] sm:$0xff]
        %v273 = vld [vmem:[%s217 + $0x48] sm:$0xff]
        %v274 = vld [vmem:[%s217 + $0x50] sm:$0xff]
        %v275 = vld [vmem:[%s217 + $0x58] sm:$0xff]
        %v276 = vld [vmem:[%s217 + $0x60] sm:$0xff]
        %v277 = vld [vmem:[%s217 + $0x68] sm:$0xff]
        %v278 = vld [vmem:[%s217 + $0x70] sm:$0xff]
        %v279 = vld [vmem:[%s217 + $0x78] sm:$0xff]
        %v280 = vld [vmem:[%s217 + $0x80] sm:$0xff]
        %v281 = vld [vmem:[%s217 + $0x88] sm:$0xff]
        %v282 = vld [vmem:[%s217 + $0x90] sm:$0xff]
        %v283 = vld [vmem:[%s217 + $0x98] sm:$0xff]
        %v284 = vld [vmem:[%s217 + $0xa0] sm:$0xff]
        %v285 = vld [vmem:[%s217 + $0xa8] sm:$0xff]
        %v286 = vld [vmem:[%s217 + $0xb0] sm:$0xff]
        %v287 = vld [vmem:[%s217 + $0xb8] sm:$0xff]
        %v288 = vld [vmem:[%s217 + $0xc0] sm:$0xff]
        %v289 = vld [vmem:[%s217 + $0xc8] sm:$0xff]
        %v290 = vld [vmem:[%s217 + $0xd0] sm:$0xff]
        %v291 = vld [vmem:[%s217 + $0xd8] sm:$0xff]
        %v292 = vld [vmem:[%s217 + $0xe0] sm:$0xff]
        %v293 = vld [vmem:[%s217 + $0xe8] sm:$0xff]
        %v294 = vld [vmem:[%s217 + $0xf0] sm:$0xff]
        %v295 = vld [vmem:[%s217 + $0xf8] sm:$0xff]
        %v296 = vld [vmem:[%s217 + $0x100] sm:$0xff]
        %v297 = vld [vmem:[%s217 + $0x108] sm:$0xff]
        %v298 = vld [vmem:[%s217 + $0x110] sm:$0xff]
        %v299 = vld [vmem:[%s217 + $0x118] sm:$0xff]
        %v300 = vld [vmem:[%s217 + $0x120] sm:$0xff]
        %v301 = vld [vmem:[%s217 + $0x128] sm:$0xff]
        %v302 = vld [vmem:[%s217 + $0x130] sm:$0xff]
        %v303 = vld [vmem:[%s217 + $0x138] sm:$0xff]
        %v304 = vld [vmem:[%s217 + $0x140] sm:$0xff]
        %v305 = vld [vmem:[%s217 + $0x148] sm:$0xff]
        %v306 = vld [vmem:[%s217 + $0x150] sm:$0xff]
        %v307 = vld [vmem:[%s217 + $0x158] sm:$0xff]
        %v308 = vld [vmem:[%s217 + $0x160] sm:$0xff]
        %v309 = vld [vmem:[%s217 + $0x168] sm:$0xff]
        %v310 = vld [vmem:[%s217 + $0x170] sm:$0xff]
        %v311 = vld [vmem:[%s217 + $0x178] sm:$0xff]
        %v312 = vld [vmem:[%s217 + $0x180] sm:$0xff]
        %v313 = vld [vmem:[%s217 + $0x188] sm:$0xff]
        %v314 = vld [vmem:[%s217 + $0x190] sm:$0xff]
        %v315 = vld [vmem:[%s217 + $0x198] sm:$0xff]
        %v316 = vld [vmem:[%s217 + $0x1a0] sm:$0xff]
        %v317 = vld [vmem:[%s217 + $0x1a8] sm:$0xff]
        %v318 = vld [vmem:[%s217 + $0x1b0] sm:$0xff]
        %v319 = vld [vmem:[%s217 + $0x1b8] sm:$0xff]
        %v320 = vld [vmem:[%s217 + $0x1c0] sm:$0xff]
        %v321 = vld [vmem:[%s217 + $0x1c8] sm:$0xff]
        %v322 = vld [vmem:[%s217 + $0x1d0] sm:$0xff]
        %v323 = vld [vmem:[%s217 + $0x1d8] sm:$0xff]
        %v324 = vld [vmem:[%s217 + $0x1e0] sm:$0xff]
        %v325 = vld [vmem:[%s217 + $0x1e8] sm:$0xff]
        %v326 = vld [vmem:[%s217 + $0x1f0] sm:$0xff]
        %v327 = vld [vmem:[%s217 + $0x1f8] sm:$0xff]
        %v330 = vunpack.c.l.b16 %v262
        %v331 = vunpack.c.h.b16 %v262
        %v332 = vunpack.c.l.b16 %v263
        %v333 = vunpack.c.h.b16 %v263
        %v334 = vpack.c.b16 %v330, %v330
        %v335 = vpack.c.b16 %v331, %v331
        %v336 = vpack.c.b16 %v332, %v332
        %v337 = vpack.c.b16 %v333, %v333
        %v406 = vunpack.c.l.b16 %v264
        %v407 = vunpack.c.h.b16 %v264
        %v408 = vunpack.c.l.b16 %v265
        %v409 = vunpack.c.h.b16 %v265
        %v410 = vunpack.c.l.b16 %v266
        %v411 = vunpack.c.h.b16 %v266
        %v412 = vunpack.c.l.b16 %v267
        %v413 = vunpack.c.h.b16 %v267
        %v414 = vunpack.c.l.b16 %v268
        %v415 = vunpack.c.h.b16 %v268
        %v416 = vunpack.c.l.b16 %v269
        %v417 = vunpack.c.h.b16 %v269
        %v418 = vunpack.c.l.b16 %v270
        %v419 = vunpack.c.h.b16 %v270
        %v420 = vunpack.c.l.b16 %v271
        %v421 = vunpack.c.h.b16 %v271
        %v422 = vunpack.c.l.b16 %v272
        %v423 = vunpack.c.h.b16 %v272
        %v424 = vunpack.c.l.b16 %v273
        %v425 = vunpack.c.h.b16 %v273
        %v426 = vunpack.c.l.b16 %v274
        %v427 = vunpack.c.h.b16 %v274
        %v428 = vunpack.c.l.b16 %v275
        %v429 = vunpack.c.h.b16 %v275
        %v430 = vunpack.c.l.b16 %v276
        %v431 = vunpack.c.h.b16 %v276
        %v432 = vunpack.c.l.b16 %v277
        %v433 = vunpack.c.h.b16 %v277
        %v434 = vunpack.c.l.b16 %v278
        %v435 = vunpack.c.h.b16 %v278
        %v436 = vunpack.c.l.b16 %v279
        %v437 = vunpack.c.h.b16 %v279
        %v438 = vunpack.c.l.b16 %v280
        %v439 = vunpack.c.h.b16 %v280
        %v440 = vunpack.c.l.b16 %v281
        %v441 = vunpack.c.h.b16 %v281
        %v442 = vunpack.c.l.b16 %v282
        %v443 = vunpack.c.h.b16 %v282
        %v444 = vunpack.c.l.b16 %v283
        %v445 = vunpack.c.h.b16 %v283
        %v446 = vunpack.c.l.b16 %v284
        %v447 = vunpack.c.h.b16 %v284
        %v448 = vunpack.c.l.b16 %v285
        %v449 = vunpack.c.h.b16 %v285
        %v450 = vunpack.c.l.b16 %v286
        %v451 = vunpack.c.h.b16 %v286
        %v452 = vunpack.c.l.b16 %v287
        %v453 = vunpack.c.h.b16 %v287
        %v454 = vunpack.c.l.b16 %v288
        %v455 = vunpack.c.h.b16 %v288
        %v456 = vunpack.c.l.b16 %v289
        %v457 = vunpack.c.h.b16 %v289
        %v458 = vunpack.c.l.b16 %v290
        %v459 = vunpack.c.h.b16 %v290
        %v460 = vunpack.c.l.b16 %v291
        %v461 = vunpack.c.h.b16 %v291
        %v462 = vunpack.c.l.b16 %v292
        %v463 = vunpack.c.h.b16 %v292
        %v464 = vunpack.c.l.b16 %v293
        %v465 = vunpack.c.h.b16 %v293
        %v466 = vunpack.c.l.b16 %v294
        %v467 = vunpack.c.h.b16 %v294
        %v468 = vunpack.c.l.b16 %v295
        %v469 = vunpack.c.h.b16 %v295
        %v470 = vunpack.c.l.b16 %v296
        %v471 = vunpack.c.h.b16 %v296
        %v472 = vunpack.c.l.b16 %v297
        %v473 = vunpack.c.h.b16 %v297
        %v474 = vunpack.c.l.b16 %v298
        %v475 = vunpack.c.h.b16 %v298
        %v476 = vunpack.c.l.b16 %v299
        %v477 = vunpack.c.h.b16 %v299
        %v478 = vunpack.c.l.b16 %v300
        %v479 = vunpack.c.h.b16 %v300
        %v480 = vunpack.c.l.b16 %v301
        %v481 = vunpack.c.h.b16 %v301
        %v482 = vunpack.c.l.b16 %v302
        %v483 = vunpack.c.h.b16 %v302
        %v484 = vunpack.c.l.b16 %v303
        %v485 = vunpack.c.h.b16 %v303
        %v486 = vunpack.c.l.b16 %v304
        %v487 = vunpack.c.h.b16 %v304
        %v488 = vunpack.c.l.b16 %v305
        %v489 = vunpack.c.h.b16 %v305
        %v490 = vunpack.c.l.b16 %v306
        %v491 = vunpack.c.h.b16 %v306
        %v492 = vunpack.c.l.b16 %v307
        %v493 = vunpack.c.h.b16 %v307
        %v494 = vunpack.c.l.b16 %v308
        %v495 = vunpack.c.h.b16 %v308
        %v496 = vunpack.c.l.b16 %v309
        %v497 = vunpack.c.h.b16 %v309
        %v498 = vunpack.c.l.b16 %v310
        %v499 = vunpack.c.h.b16 %v310
        %v500 = vunpack.c.l.b16 %v311
        %v501 = vunpack.c.h.b16 %v311
        %v502 = vunpack.c.l.b16 %v312
        %v503 = vunpack.c.h.b16 %v312
        %v504 = vunpack.c.l.b16 %v313
        %v505 = vunpack.c.h.b16 %v313
        %v506 = vunpack.c.l.b16 %v314
        %v507 = vunpack.c.h.b16 %v314
        %v508 = vunpack.c.l.b16 %v315
        %v509 = vunpack.c.h.b16 %v315
        %v510 = vunpack.c.l.b16 %v316
        %v511 = vunpack.c.h.b16 %v316
        %v512 = vunpack.c.l.b16 %v317
        %v513 = vunpack.c.h.b16 %v317
        %v514 = vunpack.c.l.b16 %v318
        %v515 = vunpack.c.h.b16 %v318
        %v516 = vunpack.c.l.b16 %v319
        %v517 = vunpack.c.h.b16 %v319
        %v518 = vunpack.c.l.b16 %v320
        %v519 = vunpack.c.h.b16 %v320
        %v520 = vunpack.c.l.b16 %v321
        %v521 = vunpack.c.h.b16 %v321
        %v522 = vunpack.c.l.b16 %v322
        %v523 = vunpack.c.h.b16 %v322
        %v524 = vunpack.c.l.b16 %v323
        %v525 = vunpack.c.h.b16 %v323
        %v526 = vunpack.c.l.b16 %v324
        %v527 = vunpack.c.h.b16 %v324
        %v528 = vunpack.c.l.b16 %v325
        %v529 = vunpack.c.h.b16 %v325
        %v530 = vunpack.c.l.b16 %v326
        %v531 = vunpack.c.h.b16 %v326
        %v532 = vunpack.c.l.b16 %v327
        %v533 = vunpack.c.h.b16 %v327
        %v534 = vpack.c.b16 %v408, %v406
        %v535 = vpack.c.b16 %v409, %v407
        %v536 = vpack.c.b16 %v412, %v410
        %v537 = vpack.c.b16 %v413, %v411
        %v538 = vpack.c.b16 %v416, %v414
        %v539 = vpack.c.b16 %v417, %v415
        %v540 = vpack.c.b16 %v420, %v418
        %v541 = vpack.c.b16 %v421, %v419
        %v542 = vpack.c.b16 %v424, %v422
        %v543 = vpack.c.b16 %v425, %v423
        %v544 = vpack.c.b16 %v428, %v426
        %v545 = vpack.c.b16 %v429, %v427
        %v546 = vpack.c.b16 %v432, %v430
        %v547 = vpack.c.b16 %v433, %v431
        %v548 = vpack.c.b16 %v436, %v434
        %v549 = vpack.c.b16 %v437, %v435
        %v550 = vpack.c.b16 %v440, %v438
        %v551 = vpack.c.b16 %v441, %v439
        %v552 = vpack.c.b16 %v444, %v442
        %v553 = vpack.c.b16 %v445, %v443
        %v554 = vpack.c.b16 %v448, %v446
        %v555 = vpack.c.b16 %v449, %v447
        %v556 = vpack.c.b16 %v452, %v450
        %v557 = vpack.c.b16 %v453, %v451
        %v558 = vpack.c.b16 %v456, %v454
        %v559 = vpack.c.b16 %v457, %v455
        %v560 = vpack.c.b16 %v460, %v458
        %v561 = vpack.c.b16 %v461, %v459
        %v562 = vpack.c.b16 %v464, %v462
        %v563 = vpack.c.b16 %v465, %v463
        %v564 = vpack.c.b16 %v468, %v466
        %v565 = vpack.c.b16 %v469, %v467
        %v566 = vpack.c.b16 %v472, %v470
        %v567 = vpack.c.b16 %v473, %v471
        %v568 = vpack.c.b16 %v476, %v474
        %v569 = vpack.c.b16 %v477, %v475
        %v570 = vpack.c.b16 %v480, %v478
        %v571 = vpack.c.b16 %v481, %v479
        %v572 = vpack.c.b16 %v484, %v482
        %v573 = vpack.c.b16 %v485, %v483
        %v574 = vpack.c.b16 %v488, %v486
        %v575 = vpack.c.b16 %v489, %v487
        %v576 = vpack.c.b16 %v492, %v490
        %v577 = vpack.c.b16 %v493, %v491
        %v578 = vpack.c.b16 %v496, %v494
        %v579 = vpack.c.b16 %v497, %v495
        %v580 = vpack.c.b16 %v500, %v498
        %v581 = vpack.c.b16 %v501, %v499
        %v582 = vpack.c.b16 %v504, %v502
        %v583 = vpack.c.b16 %v505, %v503
        %v584 = vpack.c.b16 %v508, %v506
        %v585 = vpack.c.b16 %v509, %v507
        %v586 = vpack.c.b16 %v512, %v510
        %v587 = vpack.c.b16 %v513, %v511
        %v588 = vpack.c.b16 %v516, %v514
        %v589 = vpack.c.b16 %v517, %v515
        %v590 = vpack.c.b16 %v520, %v518
        %v591 = vpack.c.b16 %v521, %v519
        %v592 = vpack.c.b16 %v524, %v522
        %v593 = vpack.c.b16 %v525, %v523
        %v594 = vpack.c.b16 %v528, %v526
        %v595 = vpack.c.b16 %v529, %v527
        %v596 = vpack.c.b16 %v532, %v530
        %v597 = vpack.c.b16 %v533, %v531
        %662 = vmatprep.subr.bf16.mxu0 %v549
        %663 = vmatpush1.bf16.msra.mxu0 %v548
        %664 = vmatprep.subr.bf16.mxu0 %v547
        %665 = vmatpush1.bf16.msra.mxu0 %v546
        %666 = vmatprep.subr.bf16.mxu0 %v545
        %667 = vmatpush1.bf16.msra.mxu0 %v544
        %668 = vmatprep.subr.bf16.mxu0 %v543
        %669 = vmatpush1.bf16.msra.mxu0 %v542
        %670 = vmatprep.subr.bf16.mxu0 %v541
        %671 = vmatpush1.bf16.msra.mxu0 %v540
        %672 = vmatprep.subr.bf16.mxu0 %v539
        %673 = vmatpush1.bf16.msra.mxu0 %v538
        %674 = vmatprep.subr.bf16.mxu0 %v537
        %675 = vmatpush1.bf16.msra.mxu0 %v536
        %676 = vmatprep.subr.bf16.mxu0 %v535
        %677 = vmatpush1.bf16.msra.mxu0 %v534
        %678 = vmatprep.subr.bf16.mxu0 %v565
        %679 = vmatpush2.bf16.msra.mxu0 %v564
        %680 = vmatprep.subr.bf16.mxu0 %v563
        %681 = vmatpush2.bf16.msra.mxu0 %v562
        %682 = vmatprep.subr.bf16.mxu0 %v561
        %683 = vmatpush2.bf16.msra.mxu0 %v560
        %684 = vmatprep.subr.bf16.mxu0 %v559
        %685 = vmatpush2.bf16.msra.mxu0 %v558
        %686 = vmatprep.subr.bf16.mxu0 %v557
        %687 = vmatpush2.bf16.msra.mxu0 %v556
        %688 = vmatprep.subr.bf16.mxu0 %v555
        %689 = vmatpush2.bf16.msra.mxu0 %v554
        %690 = vmatprep.subr.bf16.mxu0 %v553
        %691 = vmatpush2.bf16.msra.mxu0 %v552
        %692 = vmatprep.subr.bf16.mxu0 %v551
        %693 = vmatpush2.bf16.msra.mxu0 %v550
        %694 = vmatprep.mubr.bf16.mxu0 %v335
        %695 = vmatmul.mubr.bf16.gmra.mxu0 %v334
        %v696 = vpop.f32.mrf.mxu0
        %v697 = vadd.f32 0.0, %v696
        %v698 = vpop.f32.mrf.mxu0
        %v699 = vadd.f32 0.0, %v698
        %v700 = vpop.f32.mrf.mxu0
        %v701 = vpop.f32.mrf.mxu0
        %702 = vdwg.mxu0
        %703 = vmatprep.subr.bf16.mxu0 %v581
        %704 = vmatpush1.bf16.msra.mxu0 %v580
        %705 = vmatprep.subr.bf16.mxu0 %v579
        %706 = vmatpush1.bf16.msra.mxu0 %v578
        %707 = vmatprep.subr.bf16.mxu0 %v577
        %708 = vmatpush1.bf16.msra.mxu0 %v576
        %709 = vmatprep.subr.bf16.mxu0 %v575
        %710 = vmatpush1.bf16.msra.mxu0 %v574
        %711 = vmatprep.subr.bf16.mxu0 %v573
        %712 = vmatpush1.bf16.msra.mxu0 %v572
        %713 = vmatprep.subr.bf16.mxu0 %v571
        %714 = vmatpush1.bf16.msra.mxu0 %v570
        %715 = vmatprep.subr.bf16.mxu0 %v569
        %716 = vmatpush1.bf16.msra.mxu0 %v568
        %717 = vmatprep.subr.bf16.mxu0 %v567
        %718 = vmatpush1.bf16.msra.mxu0 %v566
        %719 = vmatprep.subr.bf16.mxu0 %v597
        %720 = vmatpush2.bf16.msra.mxu0 %v596
        %721 = vmatprep.subr.bf16.mxu0 %v595
        %722 = vmatpush2.bf16.msra.mxu0 %v594
        %723 = vmatprep.subr.bf16.mxu0 %v593
        %724 = vmatpush2.bf16.msra.mxu0 %v592
        %725 = vmatprep.subr.bf16.mxu0 %v591
        %726 = vmatpush2.bf16.msra.mxu0 %v590
        %727 = vmatprep.subr.bf16.mxu0 %v589
        %728 = vmatpush2.bf16.msra.mxu0 %v588
        %729 = vmatprep.subr.bf16.mxu0 %v587
        %730 = vmatpush2.bf16.msra.mxu0 %v586
        %731 = vmatprep.subr.bf16.mxu0 %v585
        %732 = vmatpush2.bf16.msra.mxu0 %v584
        %733 = vmatprep.subr.bf16.mxu0 %v583
        %734 = vmatpush2.bf16.msra.mxu0 %v582
        %735 = vmatprep.mubr.bf16.mxu0 %v337
        %736 = vmatmul.mubr.bf16.gmra.mxu0 %v336
        %v737 = vpop.f32.mrf.mxu0
        %v738 = vadd.f32 %v697, %v737
        %v739 = vpop.f32.mrf.mxu0
        %v740 = vadd.f32 %v699, %v739
        %v741 = vpop.f32.mrf.mxu0
        %v742 = vpop.f32.mrf.mxu0
        %743 = vdwg.mxu0
        %p744 = scmp.eq.s32.totalorder %s26, 0
        // Predicated region
        $region45: #{tpu_custom_call.1} parent=31 // pred_check
          %p745 = pneg %p744
        $region46: #{tpu_custom_call.1} parent=31 // pred_check_branch
          %747 = sbr.rel (%p745) target = $region48
        $region47: #{tpu_custom_call.1} parent=31 // pred_region
          %748 = vst [vmem:[%s253] sm:$0xff] %v738
          %749 = vst [vmem:[%s253 + $0x8] sm:$0xff] %v740
        $region48: #{tpu_custom_call.1} parent=31 // pred_fallthru
          _
        %p750 = scmp.ne.s32.totalorder %s26, 0
        // Predicated region
        $region49: #{tpu_custom_call.1} parent=31 // pred_check
          %p751 = pneg %p750
        $region50: #{tpu_custom_call.1} parent=31 // pred_check_branch
          %753 = sbr.rel (%p751) target = $region52
        $region51: #{tpu_custom_call.1} parent=31 // pred_region
          %v754 = vld [vmem:[%s253] sm:$0xff]
          %v755 = vld [vmem:[%s253 + $0x8] sm:$0xff]
          %v756 = vadd.f32 %v754, %v738
          %v757 = vadd.f32 %v755, %v740
          %758 = vst [vmem:[%s253] sm:$0xff] %v756
          %759 = vst [vmem:[%s253 + $0x8] sm:$0xff] %v757
        $region52: #{tpu_custom_call.1} parent=31 // pred_fallthru
          _
        // Predicated region
        $region53: #{tpu_custom_call.1} parent=31 // pred_check
          %p760 = pneg %p744
        $region54: #{tpu_custom_call.1} parent=31 // pred_check_branch
          %762 = sbr.rel (%p760) target = $region56
        $region55: #{tpu_custom_call.1} parent=31 // pred_region
          %v763 = vld [vmem:[%s253] sm:$0xff]
          %v764 = vld [vmem:[%s253 + $0x8] sm:$0xff]
          %v765 = vld [vmem:[%s226] sm:$0x3]
          %v767 = vlaneseq
          %v768 = vshrl.u32 %v767, 7
          %v769 = vsub.s32 0, %v768
          %v770 = vrot.slane %v765, %v769
          %v771 = vlaneseq
          %v772 = vshrl.u32 %v771, 7
          %v773 = vsub.s32 1, %v772
          %v774 = vrot.slane %v765, %v773
          %v777 = vadd.f32 %v763, %v770
          %v778 = vadd.f32 %v764, %v774
          %779 = vst [vmem:[%s253] sm:$0xff] %v777
          %780 = vst [vmem:[%s253 + $0x8] sm:$0xff] %v778
        $region56: #{tpu_custom_call.1} parent=31 // pred_fallthru
          _
        %s781 = sand.u32 %s116, 1
        %s782 = scalar_lea.sflag [#allocation4], %s781
        %s783 = sand.u32 %s116, 1
        %s784 = smul.addr %s783, 16
        %s785 = scalar_lea.vmem [#allocation8], %s784
        // Predicated region
        $region57: #{tpu_custom_call.1} parent=31 // pred_check
          %p786 = pneg %p126
        $region58: #{tpu_custom_call.1} parent=31 // pred_check_branch
          %788 = sbr.rel (%p786) target = $region60
        $region59: #{tpu_custom_call.1} parent=31 // pred_region
          %s789 = smul.u32 2, %s25
          %s791 = ssub.s32 256, 256
          %792 = vsyncadd %s782, %s791
          %s793 = smul.addr %s789, 128
          %s794 = scalar_lea.hbm %s3, %s793
          %s796 = sshll.u32 %s785, 4
          %s797 = int_to_ptr.vmem [resolvable:$true] %s796
          %799 = dma.vmem_to_hbm [thread:$0]  %s797, 256, %s794, %s782
        $region60: #{tpu_custom_call.1} parent=31 // pred_fallthru
          _
      $region32: #{tpu_custom_call.1} parent=5 // pred_fallthru
        _
      %p800 = scmp.le.s32.totalorder 2, %s16
      // Predicated region
      $region61: #{tpu_custom_call.1} parent=5 // pred_check
        %p801 = pneg %p800
      $region62: #{tpu_custom_call.1} parent=5 // pred_check_branch
        %803 = sbr.rel (%p801) target = $region64
      $region63: #{tpu_custom_call.1} parent=5 // pred_region
        %s804 = ssub.s32 %s16, 2
        // Predicated region
        $region65: #{tpu_custom_call.1} parent=63 // pred_check
          %p805 = pneg %p132
        $region66: #{tpu_custom_call.1} parent=63 // pred_check_branch
          %807 = sbr.rel (%p805) target = $region68
        $region67: #{tpu_custom_call.1} parent=63 // pred_region
          %s808 = sand.u32 %s117, 1
          %s809 = scalar_lea.sflag [#allocation4], %s808
          %s810 = sand.u32 %s117, 1
          %s811 = smul.addr %s810, 16
          %s812 = scalar_lea.vmem [#allocation8], %s811
          %813 = dma.done %s809, 256
        $region68: #{tpu_custom_call.1} parent=63 // pred_fallthru
          _
      $region64: #{tpu_custom_call.1} parent=5 // pred_fallthru
        _
    $region6: #{tpu_custom_call.1} parent=1 // loop_footer
      %s20 = sadd.s32 1, %s16
    $region7: #{tpu_custom_call.1} parent=1 // loop_footer_branch
      %15 = sbr.rel target = $region3
    $region8: #{tpu_custom_call.1} parent=1 // loop_exit
      _
    %814 = vsyncpa [#allocation3], 1
    %s815 = scalar_lea.sflag [#allocation3], 1
    %816 = vsyncpa %s815, 1
    %817 = vsyncpa [#allocation6], 1
    %s818 = scalar_lea.sflag [#allocation6], 1
    %819 = vsyncpa %s818, 1
    %820 = vsyncpa [#allocation4], 1
    %s821 = scalar_lea.sflag [#allocation4], 1
    %822 = vsyncpa %s821, 1

</llo_original>
